<compile_context>
chip_gen: v7x
topology: tpu7x:2x2x1
jax: 0.10.0
libtpu: 0.0.40
codegen_flags: <defaults>
</compile_context>

<pallas_src>
import numpy as np
import jax
import jax.numpy as jnp
from jax.experimental import pallas as pl
from jax.experimental.pallas import tpu as pltpu

number_modality = 4
number_targets = 3
fast_dev_run = True

NUM_TIMESTEPS = 1000
UNCER_STEP = 2 if fast_dev_run else 4
NUM_SAMPLE_STEPS = 10  # space_timesteps(1000, [10]) -> 10 ddim steps

# ---- dense-packing / tiling constants ----------------------------------------
LANE = 512            # lane width per block (multiple of 128) -> lane-dense stores
SUBLANE = 8           # sublane granularity
# Elements per grid step per stream-slab.  512 KiB (f32) per (stream, U) slab:
#   fusion worst case U=4: 2 streams * 4 * 512KiB * 2 buffers ~= 8 MiB resident,
#   safe on v7x (64 MiB VMEM) and under v5e's 16 MiB scoped default.
# On v5e/v6e this can be raised 2-4x.
DEFAULT_BLOCK_ELEMS = 128 * 1024
VMEM_LIMIT_BYTES = 64 * 1024 * 1024


def get_named_beta_schedule_linear(num_diffusion_timesteps):
    scale = 1000.0 / num_diffusion_timesteps
    beta_start = scale * 0.0001
    beta_end = scale * 0.02
    return np.linspace(beta_start, beta_end, num_diffusion_timesteps, dtype=np.float64)


def _plan_rows(n_elems, max_block_elems=DEFAULT_BLOCK_ELEMS):
    """Pack n_elems into a (rows, LANE) slab; return (rows_padded, tile_rows)."""
    rows = -(-n_elems // LANE)                       # ceil
    rows = -(-rows // SUBLANE) * SUBLANE             # round up to multiple of 8
    max_rows = max(SUBLANE, (max_block_elems // LANE) // SUBLANE * SUBLANE)
    tile_rows = min(rows, max_rows)
    rows_padded = -(-rows // tile_rows) * tile_rows  # round up to multiple of tile
    return rows_padded, tile_rows


def _pack(x_flat, rows):
    """(..., N) -> (..., rows, LANE), zero-padded on the flat axis."""
    n = x_flat.shape[-1]
    pad = rows * LANE - n
    if pad:
        pad_widths = [(0, 0)] * (x_flat.ndim - 1) + [(0, pad)]
        x_flat = jnp.pad(x_flat, pad_widths)
    return x_flat.reshape(x_flat.shape[:-1] + (rows, LANE))


# --------------------------------------------------------------------------
# Pallas kernel 1: diffusion q_sample (elementwise, per-batch scalar coeffs)
# --------------------------------------------------------------------------
def _q_sample_kernel(c1_ref, c2_ref, x_ref, noise_ref, out_ref):
    b = pl.program_id(0)
    c1 = c1_ref[b]                                   # scalar from SMEM
    c2 = c2_ref[b]
    x = x_ref[...].astype(jnp.float32)               # (TILE_ROWS, LANE)
    n = noise_ref[...].astype(jnp.float32)
    out_ref[...] = (c1 * x + c2 * n).astype(out_ref.dtype)


def q_sample_pallas(x, t, noise, sqrt_ac, sqrt_1m_ac,
                    max_block_elems=DEFAULT_BLOCK_ELEMS):
    B, C, D, H, W = x.shape
    N = C * D * H * W
    rows, tile_rows = _plan_rows(N, max_block_elems)

    x2 = _pack(x.reshape(B, N), rows)                # (B, rows, LANE), dtype preserved
    n2 = _pack(noise.reshape(B, N), rows)
    c1 = sqrt_ac[t].astype(jnp.float32)              # (B,) gather done in glue
    c2 = sqrt_1m_ac[t].astype(jnp.float32)           # (B,)

    blk = (pl.Squeezed(), tile_rows, LANE)
    grid_spec = pltpu.PrefetchScalarGridSpec(
        num_scalar_prefetch=2,
        grid=(B, rows // tile_rows),
        in_specs=[
            pl.BlockSpec(blk, lambda b, s, c1r, c2r: (b, s, 0)),
            pl.BlockSpec(blk, lambda b, s, c1r, c2r: (b, s, 0)),
        ],
        out_specs=pl.BlockSpec(blk, lambda b, s, c1r, c2r: (b, s, 0)),
    )
    out = pl.pallas_call(
        _q_sample_kernel,
        out_shape=jax.ShapeDtypeStruct((B, rows, LANE), x.dtype),
        grid_spec=grid_spec,
        compiler_params=pltpu.CompilerParams(
            dimension_semantics=("parallel", "parallel"),
            vmem_limit_bytes=VMEM_LIMIT_BYTES,
        ),
    )(c1, c2, x2, n2)
    return out.reshape(B, rows * LANE)[:, :N].reshape(B, C, D, H, W)


# --------------------------------------------------------------------------
# Pallas kernel 2: ddim_sample uncertainty-weighted fusion
#   grid = (B, spatial_tiles, T); T innermost ('arbitrary') with a resident
#   accumulator for sample_return; uncers written directly in (B, T, C*S) order.
# --------------------------------------------------------------------------
def _fusion_kernel(sigv_ref, mo_ref, sp_ref, sr_ref, unc_ref):
    t = pl.program_id(2)

    @pl.when(t == 0)
    def _():
        sr_ref[...] = jnp.zeros_like(sr_ref)

    u = mo_ref.shape[0]
    mo = mo_ref[...].astype(jnp.float32)                     # (U, TILE_ROWS, LANE)
    uncer_out = jnp.sum(mo, axis=0) * jnp.float32(1.0 / u)   # mean over uncer_step

    p = jax.nn.sigmoid(uncer_out)
    p = jnp.maximum(p, jnp.float32(0.001))                   # pred_out[pred_out<0.001]=0.001
    uncer = -p * jnp.log(p)                                  # compute_uncer
    unc_ref[...] = uncer

    # w is independent of the U axis -> factor it out of the sum
    # (saves U-1 vmuls per element and the (U, ...) broadcast product).
    w = jnp.exp(sigv_ref[t] * (1.0 - uncer))
    sp_sum = jnp.sum(sp_ref[...].astype(jnp.float32), axis=0)
    sr_ref[...] += w * sp_sum


def uncertainty_fusion_pallas(all_model_outputs, all_samples,
                              max_block_elems=DEFAULT_BLOCK_ELEMS):
    # all_model_outputs / all_samples: (UNCER_STEP, T, B, C, D, H, W)
    U, T, B, C, D, H, W = all_model_outputs.shape
    N = C * D * H * W
    rows, tile_rows = _plan_rows(N, max_block_elems)

    mo = _pack(all_model_outputs.reshape(U, T, B, N), rows)  # (U, T, B, rows, LANE)
    sp = _pack(all_samples.reshape(U, T, B, N), rows)
    # sigmoid((index+1)/10) per ddim index, computed once (glue, goes to SMEM)
    sigv = jax.nn.sigmoid(jnp.arange(1, T + 1, dtype=jnp.float32) / 10.0)

    in_blk = (U, pl.Squeezed(), pl.Squeezed(), tile_rows, LANE)

    def in_map(b, s, t, sv):
        return (0, t, b, s, 0)

    grid_spec = pltpu.PrefetchScalarGridSpec(
        num_scalar_prefetch=1,
        grid=(B, rows // tile_rows, T),                      # T innermost -> accumulator
        in_specs=[
            pl.BlockSpec(in_blk, in_map),
            pl.BlockSpec(in_blk, in_map),
        ],
        out_specs=(
            # accumulator: block index independent of t -> stays resident across T
            pl.BlockSpec((pl.Squeezed(), tile_rows, LANE),
                         lambda b, s, t, sv: (b, s, 0)),
            # per-index uncer, already in (B, T, C*S) order
            pl.BlockSpec((pl.Squeezed(), pl.Squeezed(), tile_rows, LANE),
                         lambda b, s, t, sv: (b, t, s, 0)),
        ),
    )
    sample_return, uncers = pl.pallas_call(
        _fusion_kernel,
        out_shape=(
            jax.ShapeDtypeStruct((B, rows, LANE), jnp.float32),
            jax.ShapeDtypeStruct((B, T, rows, LANE), jnp.float32),
        ),
        grid_spec=grid_spec,
        compiler_params=pltpu.CompilerParams(
            dimension_semantics=("parallel", "parallel", "arbitrary"),
            vmem_limit_bytes=VMEM_LIMIT_BYTES,
        ),
    )(sigv, mo, sp)

    sample_return = sample_return.reshape(B, rows * LANE)[:, :N].reshape(B, C, D, H, W)
    # (B, T, C*S) layout -> torch.cat(all_uncers, dim=1) is a free contiguous reshape.
    stacked_uncers = uncers.reshape(B, T, rows * LANE)[:, :, :N].reshape(B, T * C, D, H, W)
    return sample_return, stacked_uncers


# --------------------------------------------------------------------------
# DiffUNet wrapper (diffusion schedule params built deterministically in-script)
# --------------------------------------------------------------------------
class DiffUNetPallas:
    def __init__(self):
        betas = get_named_beta_schedule_linear(NUM_TIMESTEPS)       # linear schedule
        alphas = 1.0 - betas
        alphas_cumprod = np.cumprod(alphas)
        self.sqrt_ac = jnp.asarray(np.sqrt(alphas_cumprod), dtype=jnp.float32)
        self.sqrt_1m_ac = jnp.asarray(np.sqrt(1.0 - alphas_cumprod), dtype=jnp.float32)

    def forward(self, image=None, x=None, pred_type=None, step=None, embedding=None,
                key=None, all_model_outputs=None, all_samples=None):
        if pred_type == 'q_sample':
            k_noise, k_t = jax.random.split(key)
            noise = jax.random.normal(k_noise, x.shape, dtype=x.dtype)
            # UniformSampler(1000).sample -> uniform timesteps (weights unused here)
            t = jax.random.randint(k_t, (x.shape[0],), 0, NUM_TIMESTEPS)
            x_t = q_sample_pallas(x, t, noise, self.sqrt_ac, self.sqrt_1m_ac)
            return x_t, t, noise
        elif pred_type == 'ddim_sample':
            # TODO(synk): embed_model / ddim_sample_loop (UNets) unavailable; fusion
            # consumes the sampler's per-step outputs directly.
            return uncertainty_fusion_pallas(all_model_outputs, all_samples)
        elif pred_type == 'denoise':
            # TODO(synk): BasicUNetDe forward not provided in source; cannot implement.
            raise NotImplementedError("denoise path requires BasicUNetDe (not provided)")
        else:
            raise ValueError(f"unknown pred_type: {pred_type}")


if __name__ == "__main__":
    key = jax.random.PRNGKey(0)
    k1, k2, k3, k4 = jax.random.split(key, 4)
    model = DiffUNetPallas()

    # --- q_sample path (small shapes: batch=2, C=number_targets, spatial=8^3) ---
    B, C, D, H, W = 2, number_targets, 8, 8, 8
    x = jax.random.normal(k1, (B, C, D, H, W), dtype=jnp.float32)
    x_t, t, noise = model.forward(x=x, pred_type='q_sample', key=k2)
    x_t = jax.block_until_ready(x_t)

    c1 = model.sqrt_ac[t][:, None, None, None, None]
    c2 = model.sqrt_1m_ac[t][:, None, None, None, None]
    q_ref = c1 * x + c2 * noise
    assert np.allclose(np.asarray(x_t), np.asarray(q_ref), rtol=1e-5, atol=1e-5)

    # --- ddim_sample uncertainty fusion path (batch=1, as in the module) ---
    mo = jax.random.normal(
        k3, (UNCER_STEP, NUM_SAMPLE_STEPS, 1, number_targets, D, H, W), dtype=jnp.float32)
    sp = jax.random.normal(
        k4, (UNCER_STEP, NUM_SAMPLE_STEPS, 1, number_targets, D, H, W), dtype=jnp.float32)
    sample_return, stacked_uncers = model.forward(
        pred_type='ddim_sample', all_model_outputs=mo, all_samples=sp)
    sample_return, stacked_uncers = jax.block_until_ready((sample_return, stacked_uncers))

    # pure-JAX reference for the fusion loop
    sr_ref = jnp.zeros((1, number_targets, D, H, W), jnp.float32)
    uncers_ref = []
    for index in range(NUM_SAMPLE_STEPS):
        uncer_out = jnp.mean(mo[:, index], axis=0)
        p = jax.nn.sigmoid(uncer_out)
        p = jnp.where(p < 0.001, 0.001, p)
        uncer = -p * jnp.log(p)
        uncers_ref.append(uncer)
        wgt = jnp.exp(jax.nn.sigmoid(jnp.float32((index + 1) / 10)) * (1.0 - uncer))
        for i in range(UNCER_STEP):
            sr_ref = sr_ref + wgt * sp[i, index]
    unc_ref = jnp.concatenate(uncers_ref, axis=1)

    assert sample_return.shape == (1, number_targets, D, H, W)
    assert stacked_uncers.shape == (1, NUM_SAMPLE_STEPS * number_targets, D, H, W)
    assert np.allclose(np.asarray(sample_return), np.asarray(sr_ref), rtol=1e-4, atol=1e-4)
    assert np.allclose(np.asarray(stacked_uncers), np.asarray(unc_ref), rtol=1e-4, atol=1e-4)

    print("KERNEL_OK")
</pallas_src>

<mosaic_0001>
module attributes {stable_mosaic.version = 11 : i64} {
  func.func @_q_sample_kernel(%arg0: i32, %arg1: i32, %arg2: memref<2xf32, #tpu.memory_space<smem>>, %arg3: memref<2xf32, #tpu.memory_space<smem>>, %arg4: memref<1x8x512xf32, #tpu.memory_space<vmem>>, %arg5: memref<1x8x512xf32, #tpu.memory_space<vmem>>, %arg6: memref<1x8x512xf32, #tpu.memory_space<vmem>>) attributes {dimension_semantics = [#tpu.dimension_semantics<parallel>, #tpu.dimension_semantics<parallel>], iteration_bounds = array<i64: 2, 1>, scalar_prefetch = 2 : i64, scratch_operands = 0 : i64, tpu.core_type = #tpu.core_type<tc>, window_params = [{transform_indices = @transform_0, window_bounds = array<i64: 1, 8, 512>}, {transform_indices = @transform_1, window_bounds = array<i64: 1, 8, 512>}, {transform_indices = @transform_2, window_bounds = array<i64: 1, 8, 512>}]} {
    %0 = arith.index_cast %arg0 : i32 to index
    %1 = memref.load %arg2[%0] : memref<2xf32, #tpu.memory_space<smem>>
    %2 = arith.index_cast %arg0 : i32 to index
    %3 = memref.load %arg3[%2] : memref<2xf32, #tpu.memory_space<smem>>
    %c0 = arith.constant 0 : index
    %c0_0 = arith.constant 0 : index
    %c0_1 = arith.constant 0 : index
    %4 = vector.load %arg4[%c0, %c0_0, %c0_1] : memref<1x8x512xf32, #tpu.memory_space<vmem>>, vector<1x8x512xf32>
    %5 = vector.shape_cast %4 : vector<1x8x512xf32> to vector<8x512xf32>
    %c0_2 = arith.constant 0 : index
    %c0_3 = arith.constant 0 : index
    %c0_4 = arith.constant 0 : index
    %6 = vector.load %arg5[%c0_2, %c0_3, %c0_4] : memref<1x8x512xf32, #tpu.memory_space<vmem>>, vector<1x8x512xf32>
    %7 = vector.shape_cast %6 : vector<1x8x512xf32> to vector<8x512xf32>
    %8 = vector.broadcast %1 : f32 to vector<8x512xf32>
    %9 = arith.mulf %8, %5 : vector<8x512xf32>
    %10 = vector.broadcast %3 : f32 to vector<8x512xf32>
    %11 = arith.mulf %10, %7 : vector<8x512xf32>
    %12 = arith.addf %9, %11 : vector<8x512xf32>
    %c0_5 = arith.constant 0 : index
    %c0_6 = arith.constant 0 : index
    %c0_7 = arith.constant 0 : index
    %13 = vector.load %arg6[%c0_5, %c0_6, %c0_7] : memref<1x8x512xf32, #tpu.memory_space<vmem>>, vector<1x8x512xf32>
    %14 = vector.shape_cast %13 : vector<1x8x512xf32> to vector<8x512xf32>
    %15 = vector.shape_cast %12 : vector<8x512xf32> to vector<1x8x512xf32>
    tpu.vector_store %arg6[%c0_5, %c0_6, %c0_7], %15 {strides = array<i32>} : memref<1x8x512xf32, #tpu.memory_space<vmem>>, vector<1x8x512xf32>,
    return
  }
  func.func @transform_0(%arg0: i32, %arg1: i32, %arg2: memref<2xf32, #tpu.memory_space<smem>>, %arg3: memref<2xf32, #tpu.memory_space<smem>>) -> (i32, i32, i32) {
    %c0_i32 = arith.constant 0 : i32
    %c0_i32_0 = arith.constant 0 : i32
    return %arg0, %arg1, %c0_i32 : i32, i32, i32
  }
  func.func @transform_1(%arg0: i32, %arg1: i32, %arg2: memref<2xf32, #tpu.memory_space<smem>>, %arg3: memref<2xf32, #tpu.memory_space<smem>>) -> (i32, i32, i32) {
    %c0_i32 = arith.constant 0 : i32
    %c0_i32_0 = arith.constant 0 : i32
    return %arg0, %arg1, %c0_i32 : i32, i32, i32
  }
  func.func @transform_2(%arg0: i32, %arg1: i32, %arg2: memref<2xf32, #tpu.memory_space<smem>>, %arg3: memref<2xf32, #tpu.memory_space<smem>>) -> (i32, i32, i32) {
    %c0_i32 = arith.constant 0 : i32
    %c0_i32_0 = arith.constant 0 : i32
    return %arg0, %arg1, %c0_i32 : i32, i32, i32
  }
}

</mosaic_0001>

<llo_original>
// kernel: tpu_custom_call.1
$region0: #{tpu_custom_call.1}
  #allocation0 [shape = 'u32[]', space=smem, size = 0x4, offset = 0x4, fixed_abs, tag = 'smem constant byte address 0x4 - core index']
  #allocation1 [shape = 'u32[144,128]{1,0:T(1,128)}', space=vmem, size = 0x12000, scoped, tag = 'internal scratch']
  #allocation2 [shape = 's32[1]{0}', space=sflag, size = 0x4, scoped, tag = 'scoped memory for tpu_custom_call.1']
  #allocation3 [shape = 'u8[512]{0}', space=smem, size = 0x200, scoped, tag = 'prefetched SMEM operand 0']
  #allocation4 [shape = 'u8[512]{0}', space=smem, size = 0x200, scoped, tag = 'prefetched SMEM operand 1']
  %s0 = inlined_call_operand.hbm [shape: f32[2], index: 0, kind: input, shape index: {}]
  %s1 = inlined_call_operand.hbm [shape: f32[2], index: 1, kind: input, shape index: {}]
  %s2 = inlined_call_operand.hbm [shape: f32[2,8,512], index: 2, kind: input, shape index: {}]
  %s3 = inlined_call_operand.hbm [shape: f32[2,8,512], index: 3, kind: input, shape index: {}]
  %s4 = inlined_call_operand.hbm [shape: f32[2,8,512], index: 4, kind: output, shape index: {}]
  %s5 = sld [smem:[#allocation0]]
  $region49: #{tpu_custom_call.1} parent=0
    _
  %s7 = ssub.s32 1, %s5
  %s8 = scalar_select 0, %s7, %s5
  %10 = dma.hbm_to_smem %s0, 16, [#allocation3], [#allocation2]
  %12 = dma.hbm_to_smem %s1, 16, [#allocation4], [#allocation2]
  %13 = dma.done [#allocation2], 32
  %14 = sfence
  $region1: #{tpu_custom_call.1} parent=0
    #allocation5 [shape = 'u8[32768]{0}', space=vmem, size = 0x8000, scoped, tag = 'input window, operand 2']
    #allocation6 [shape = 's32[2]{0}', space=sflag, size = 0x8, scoped, tag = 'scoped memory for tpu_custom_call.1']
    #allocation7 [shape = 's32[2]{0}', space=sflag, size = 0x8, scoped, tag = 'scoped memory for tpu_custom_call.1']
    #allocation8 [shape = 'u8[32768]{0}', space=vmem, size = 0x8000, scoped, tag = 'input window, operand 3']
    #allocation9 [shape = 's32[2]{0}', space=sflag, size = 0x8, scoped, tag = 'scoped memory for tpu_custom_call.1']
    #allocation10 [shape = 'u8[32768]{0}', space=vmem, size = 0x8000, scoped, tag = 'output window, operand 0']
    %15 = vsyncpa [#allocation6], 0
    %s16 = scalar_lea.sflag [#allocation6], 1
    %17 = vsyncpa %s16, 0
    %18 = vsyncpa [#allocation9], 0
    %s19 = scalar_lea.sflag [#allocation9], 1
    %20 = vsyncpa %s19, 0
    %21 = vsyncpa [#allocation7], 0
    %s22 = scalar_lea.sflag [#allocation7], 1
    %23 = vsyncpa %s22, 0
    loop: start=0, step=1, limit=4
    $region2: #{tpu_custom_call.1} parent=1 // loop_pre_header
      _
    $region3: #{tpu_custom_call.1} parent=1 // loop_header
      %s25 = sphi 0, %s29
      %p26 = scmp.ge.s32.totalorder %s25, 4
      %s32 = sphi 0, %s44
      %s33 = sphi 0, %s40
      %s34 = sphi 0, %s32
      %s35 = sphi 0, %s33
      %s36 = sphi 0, %s34
      %s37 = sphi 0, %s35
      %s49 = sphi 0, %s51
      %s52 = sphi 0, %s49
      %s53 = sphi 0, %s52
      %s69 = sphi 0, %s53
      %s77 = sphi 0, %s79
      %s80 = sphi 0, %s77
      %s81 = sphi 0, %s80
      %s97 = sphi 0, %s81
      %s105 = sphi 0, %s107
      %s108 = sphi 0, %s105
      %s109 = sphi 0, %s108
      %s125 = sphi 0, %s109
    $region4: #{tpu_custom_call.1} parent=1 // loop_header_branch
      %28 = sbr.rel (%p26) target = $region8
    $region5: #{tpu_custom_call.1} parent=1 // loop_body
      %s30 = ssub.s32 %s25, 1
      %s31 = ssub.s32 %s25, 2
      %s38 = sadd.s32 1, %s33
      %p39 = scmp.ge.s32.totalorder %s38, 1
      %s40 = scalar_select %p39, 0, %s38
      %s41 = sadd.s32 1, %s32
      %s42 = scalar_select %p39, %s41, %s32
      %p43 = scmp.ge.s32.totalorder %s42, 2
      %s44 = scalar_select %p43, 0, %s42
      %s45 = ssub.s32 %s32, %s44
      %s46 = ssub.s32 %s33, %s40
      %s47 = sor.u32 %s45, %s46
      %p48 = scmp.eq.s32.totalorder %s47, 0
      %s50 = sadd.s32 %s49, 1
      %s51 = scalar_select %p48, %s49, %s50
      %p54 = pneg %p48
      %p55 = scmp.eq.s32.totalorder %s25, 1
      %p56 = por %p54, %p55
      %p57 = scmp.ne.s32.totalorder %s49, %s52
      %p58 = scmp.eq.s32.totalorder %s25, 0
      %p59 = por %p57, %p58
      %p60 = scmp.ne.s32.totalorder %s49, %s52
      %p61 = scmp.eq.s32.totalorder %s30, 1
      %p62 = por %p60, %p61
      %p63 = scmp.ne.s32.totalorder %s52, %s53
      %p64 = scmp.eq.s32.totalorder %s30, 0
      %p65 = por %p63, %p64
      %p66 = scmp.ne.s32.totalorder %s52, %s53
      %p67 = scmp.eq.s32.totalorder %s31, 1
      %p68 = por %p66, %p67
      %p70 = scmp.ne.s32.totalorder %s53, %s69
      %p71 = scmp.eq.s32.totalorder %s31, 0
      %p72 = por %p70, %p71
      %s73 = ssub.s32 %s32, %s44
      %s74 = ssub.s32 %s33, %s40
      %s75 = sor.u32 %s73, %s74
      %p76 = scmp.eq.s32.totalorder %s75, 0
      %s78 = sadd.s32 %s77, 1
      %s79 = scalar_select %p76, %s77, %s78
      %p82 = pneg %p76
      %p83 = scmp.eq.s32.totalorder %s25, 1
      %p84 = por %p82, %p83
      %p85 = scmp.ne.s32.totalorder %s77, %s80
      %p86 = scmp.eq.s32.totalorder %s25, 0
      %p87 = por %p85, %p86
      %p88 = scmp.ne.s32.totalorder %s77, %s80
      %p89 = scmp.eq.s32.totalorder %s30, 1
      %p90 = por %p88, %p89
      %p91 = scmp.ne.s32.totalorder %s80, %s81
      %p92 = scmp.eq.s32.totalorder %s30, 0
      %p93 = por %p91, %p92
      %p94 = scmp.ne.s32.totalorder %s80, %s81
      %p95 = scmp.eq.s32.totalorder %s31, 1
      %p96 = por %p94, %p95
      %p98 = scmp.ne.s32.totalorder %s81, %s97
      %p99 = scmp.eq.s32.totalorder %s31, 0
      %p100 = por %p98, %p99
      %s101 = ssub.s32 %s32, %s44
      %s102 = ssub.s32 %s33, %s40
      %s103 = sor.u32 %s101, %s102
      %p104 = scmp.eq.s32.totalorder %s103, 0
      %s106 = sadd.s32 %s105, 1
      %s107 = scalar_select %p104, %s105, %s106
      %p110 = pneg %p104
      %p111 = scmp.eq.s32.totalorder %s25, 1
      %p112 = por %p110, %p111
      %p113 = scmp.ne.s32.totalorder %s105, %s108
      %p114 = scmp.eq.s32.totalorder %s25, 0
      %p115 = por %p113, %p114
      %p116 = scmp.ne.s32.totalorder %s105, %s108
      %p117 = scmp.eq.s32.totalorder %s30, 1
      %p118 = por %p116, %p117
      %p119 = scmp.ne.s32.totalorder %s108, %s109
      %p120 = scmp.eq.s32.totalorder %s30, 0
      %p121 = por %p119, %p120
      %p122 = scmp.ne.s32.totalorder %s108, %s109
      %p123 = scmp.eq.s32.totalorder %s31, 1
      %p124 = por %p122, %p123
      %p126 = scmp.ne.s32.totalorder %s109, %s125
      %p127 = scmp.eq.s32.totalorder %s31, 0
      %p128 = por %p126, %p127
      %p129 = scmp.le.s32.totalorder 1, %s25
      %p130 = scmp.lt.s32.totalorder %s25, 3
      %p131 = pnand %p129, %p130
      %p132 = pneg %p131
      // Predicated region
      $region9: #{tpu_custom_call.1} parent=5 // pred_check
        _
      $region10: #{tpu_custom_call.1} parent=5 // pred_check_branch
        %134 = sbr.rel (%p131) target = $region12
      $region11: #{tpu_custom_call.1} parent=5 // pred_region
        %s135 = ssub.s32 %s25, 1
      $region12: #{tpu_custom_call.1} parent=5 // pred_fallthru
        _
      %p136 = scmp.lt.s32.totalorder %s25, 2
      // Predicated region
      $region13: #{tpu_custom_call.1} parent=5 // pred_check
        %p137 = pneg %p136
      $region14: #{tpu_custom_call.1} parent=5 // pred_check_branch
        %139 = sbr.rel (%p137) target = $region16
      $region15: #{tpu_custom_call.1} parent=5 // pred_region
        // Predicated region
        $region17: #{tpu_custom_call.1} parent=15 // pred_check
          %p140 = pneg %p59
        $region18: #{tpu_custom_call.1} parent=15 // pred_check_branch
          %142 = sbr.rel (%p140) target = $region20
        $region19: #{tpu_custom_call.1} parent=15 // pred_region
          %s143 = sand.u32 %s49, 1
          %s144 = scalar_lea.sflag [#allocation6], %s143
          %s145 = sand.u32 %s49, 1
          %s146 = smul.addr %s145, 32
          %s147 = scalar_lea.vmem [#allocation5], %s146
          %s149 = ssub.s32 512, 512
          %150 = vsyncadd %s144, %s149
          %s151 = smul.addr %s33, 4
          %s152 = smul.addr %s32, 4
          %s153 = sadd.s32 %s151, %s152
          %s154 = smul.addr %s153, 128
          %s155 = scalar_lea.hbm %s2, %s154
          %s157 = sshll.u32 %s147, 4
          %s158 = int_to_ptr.vmem [resolvable:$true] %s157
          %160 = dma.hbm_to_vmem [thread:$0]  %s155, 512, %s158, %s144
        $region20: #{tpu_custom_call.1} parent=15 // pred_fallthru
          _
        // Predicated region
        $region21: #{tpu_custom_call.1} parent=15 // pred_check
          %p161 = pneg %p87
        $region22: #{tpu_custom_call.1} parent=15 // pred_check_branch
          %163 = sbr.rel (%p161) target = $region24
        $region23: #{tpu_custom_call.1} parent=15 // pred_region
          %s164 = sand.u32 %s77, 1
          %s165 = scalar_lea.sflag [#allocation9], %s164
          %s166 = sand.u32 %s77, 1
          %s167 = smul.addr %s166, 32
          %s168 = scalar_lea.vmem [#allocation8], %s167
          %s170 = ssub.s32 512, 512
          %171 = vsyncadd %s165, %s170
          %s172 = smul.addr %s33, 4
          %s173 = smul.addr %s32, 4
          %s174 = sadd.s32 %s172, %s173
          %s175 = smul.addr %s174, 128
          %s176 = scalar_lea.hbm %s3, %s175
          %s178 = sshll.u32 %s168, 4
          %s179 = int_to_ptr.vmem [resolvable:$true] %s178
          %181 = dma.hbm_to_vmem [thread:$0]  %s176, 512, %s179, %s165
        $region24: #{tpu_custom_call.1} parent=15 // pred_fallthru
          _
      $region16: #{tpu_custom_call.1} parent=5 // pred_fallthru
        _
      %p182 = scmp.le.s32.totalorder 1, %s25
      %p183 = scmp.lt.s32.totalorder %s25, 3
      %p184 = pnand %p182, %p183
      %p185 = pneg %p184
      // Predicated region
      $region25: #{tpu_custom_call.1} parent=5 // pred_check
        _
      $region26: #{tpu_custom_call.1} parent=5 // pred_check_branch
        %187 = sbr.rel (%p184) target = $region28
      $region27: #{tpu_custom_call.1} parent=5 // pred_region
        %s188 = ssub.s32 %s25, 1
        %s189 = sand.u32 %s52, 1
        %s190 = scalar_lea.sflag [#allocation6], %s189
        %s191 = sand.u32 %s52, 1
        %s192 = smul.addr %s191, 32
        %s193 = scalar_lea.vmem [#allocation5], %s192
        // Predicated region
        $region29: #{tpu_custom_call.1} parent=27 // pred_check
          %p194 = pneg %p65
        $region30: #{tpu_custom_call.1} parent=27 // pred_check_branch
          %196 = sbr.rel (%p194) target = $region32
        $region31: #{tpu_custom_call.1} parent=27 // pred_region
          %197 = dma.done %s190, 512
        $region32: #{tpu_custom_call.1} parent=27 // pred_fallthru
          _
        %s198 = sand.u32 %s80, 1
        %s199 = scalar_lea.sflag [#allocation9], %s198
        %s200 = sand.u32 %s80, 1
        %s201 = smul.addr %s200, 32
        %s202 = scalar_lea.vmem [#allocation8], %s201
        // Predicated region
        $region33: #{tpu_custom_call.1} parent=27 // pred_check
          %p203 = pneg %p93
        $region34: #{tpu_custom_call.1} parent=27 // pred_check_branch
          %205 = sbr.rel (%p203) target = $region36
        $region35: #{tpu_custom_call.1} parent=27 // pred_region
          %206 = dma.done %s199, 512
        $region36: #{tpu_custom_call.1} parent=27 // pred_fallthru
          _
        %s207 = sand.u32 %s52, 1
        %s208 = scalar_lea.sflag [#allocation6], %s207
        %s209 = sand.u32 %s52, 1
        %s210 = smul.addr %s209, 32
        %s211 = scalar_lea.vmem [#allocation5], %s210
        %p212 = pneg %p65
        %p213 = pneg %p62
        %s214 = sand.u32 %s80, 1
        %s215 = scalar_lea.sflag [#allocation9], %s214
        %s216 = sand.u32 %s80, 1
        %s217 = smul.addr %s216, 32
        %s218 = scalar_lea.vmem [#allocation8], %s217
        %p219 = pneg %p93
        %p220 = pneg %p90
        %p221 = pneg %p121
        %p222 = pneg %p118
        %s223 = sand.u32 %s108, 1
        %s224 = scalar_lea.sflag [#allocation7], %s223
        %s225 = sand.u32 %s108, 1
        %s226 = smul.addr %s225, 32
        %s227 = scalar_lea.vmem [#allocation10], %s226
        %s228 = sld [smem:[#allocation3 + %s34]]
        %s229 = sld [smem:[#allocation4 + %s34]]
        %v230 = vld [vmem:[%s193] sm:$0xff]
        %v231 = vld [vmem:[%s193 + $0x8] sm:$0xff]
        %v232 = vld [vmem:[%s193 + $0x10] sm:$0xff]
        %v233 = vld [vmem:[%s193 + $0x18] sm:$0xff]
        %v234 = vld [vmem:[%s202] sm:$0xff]
        %v235 = vld [vmem:[%s202 + $0x8] sm:$0xff]
        %v236 = vld [vmem:[%s202 + $0x10] sm:$0xff]
        %v237 = vld [vmem:[%s202 + $0x18] sm:$0xff]
        %v238 = vstv %s228
        %v239 = vmul.f32 %v238, %v230
        %v240 = vmul.f32 %v238, %v231
        %v241 = vmul.f32 %v238, %v232
        %v242 = vmul.f32 %v238, %v233
        %v243 = vstv %s229
        %v244 = vmul.f32 %v243, %v234
        %v245 = vmul.f32 %v243, %v235
        %v246 = vmul.f32 %v243, %v236
        %v247 = vmul.f32 %v243, %v237
        %v248 = vadd.f32 %v239, %v244
        %v249 = vadd.f32 %v240, %v245
        %v250 = vadd.f32 %v241, %v246
        %v251 = vadd.f32 %v242, %v247
        %252 = vst [vmem:[%s227] sm:$0xff] %v248
        %253 = vst [vmem:[%s227 + $0x8] sm:$0xff] %v249
        %254 = vst [vmem:[%s227 + $0x10] sm:$0xff] %v250
        %255 = vst [vmem:[%s227 + $0x18] sm:$0xff] %v251
        %s256 = sand.u32 %s108, 1
        %s257 = scalar_lea.sflag [#allocation7], %s256
        %s258 = sand.u32 %s108, 1
        %s259 = smul.addr %s258, 32
        %s260 = scalar_lea.vmem [#allocation10], %s259
        // Predicated region
        $region37: #{tpu_custom_call.1} parent=27 // pred_check
          %p261 = pneg %p118
        $region38: #{tpu_custom_call.1} parent=27 // pred_check_branch
          %263 = sbr.rel (%p261) target = $region40
        $region39: #{tpu_custom_call.1} parent=27 // pred_region
          %s265 = ssub.s32 512, 512
          %266 = vsyncadd %s257, %s265
          %s267 = smul.addr %s35, 4
          %s268 = smul.addr %s34, 4
          %s269 = sadd.s32 %s267, %s268
          %s270 = smul.addr %s269, 128
          %s271 = scalar_lea.hbm %s4, %s270
          %s273 = sshll.u32 %s260, 4
          %s274 = int_to_ptr.vmem [resolvable:$true] %s273
          %276 = dma.vmem_to_hbm [thread:$0]  %s274, 512, %s271, %s257
        $region40: #{tpu_custom_call.1} parent=27 // pred_fallthru
          _
      $region28: #{tpu_custom_call.1} parent=5 // pred_fallthru
        _
      %p277 = scmp.le.s32.totalorder 2, %s25
      // Predicated region
      $region41: #{tpu_custom_call.1} parent=5 // pred_check
        %p278 = pneg %p277
      $region42: #{tpu_custom_call.1} parent=5 // pred_check_branch
        %280 = sbr.rel (%p278) target = $region44
      $region43: #{tpu_custom_call.1} parent=5 // pred_region
        %s281 = ssub.s32 %s25, 2
        // Predicated region
        $region45: #{tpu_custom_call.1} parent=43 // pred_check
          %p282 = pneg %p124
        $region46: #{tpu_custom_call.1} parent=43 // pred_check_branch
          %284 = sbr.rel (%p282) target = $region48
        $region47: #{tpu_custom_call.1} parent=43 // pred_region
          %s285 = sand.u32 %s109, 1
          %s286 = scalar_lea.sflag [#allocation7], %s285
          %s287 = sand.u32 %s109, 1
          %s288 = smul.addr %s287, 32
          %s289 = scalar_lea.vmem [#allocation10], %s288
          %290 = dma.done %s286, 512
        $region48: #{tpu_custom_call.1} parent=43 // pred_fallthru
          _
      $region44: #{tpu_custom_call.1} parent=5 // pred_fallthru
        _
    $region6: #{tpu_custom_call.1} parent=1 // loop_footer
      %s29 = sadd.s32 1, %s25
    $region7: #{tpu_custom_call.1} parent=1 // loop_footer_branch
      %24 = sbr.rel target = $region3
    $region8: #{tpu_custom_call.1} parent=1 // loop_exit
      _
    %291 = vsyncpa [#allocation6], 1
    %s292 = scalar_lea.sflag [#allocation6], 1
    %293 = vsyncpa %s292, 1
    %294 = vsyncpa [#allocation9], 1
    %s295 = scalar_lea.sflag [#allocation9], 1
    %296 = vsyncpa %s295, 1
    %297 = vsyncpa [#allocation7], 1
    %s298 = scalar_lea.sflag [#allocation7], 1
    %299 = vsyncpa %s298, 1

</llo_original>
